<compile_context>
chip_gen: v7x
topology: tpu7x:2x2x1
jax: 0.10.0
libtpu: 0.0.40
codegen_flags: <defaults>
</compile_context>

<pallas_src>
import functools

import jax
import jax.numpy as jnp
from jax import lax
from jax.experimental import pallas as pl
from jax.experimental.pallas import tpu as pltpu


def _self_attention_kernel(x_ref, w_ref, b_ref, o_ref, slab_ref, *,
                           n_heads, head_dim, embed_dim):
    # In-kernel bf16 cast of the activations (a wrapper-side cast would be a
    # separate, un-fused XLA op costing an extra HBM pass).
    x = x_ref[...].astype(jnp.bfloat16)                               # (s, e)

    # Fused QKV projection: one MXU matmul, f32 accumulation, one bias add.
    qkv = jnp.dot(x, w_ref[...],
                  preferred_element_type=jnp.float32) + b_ref[...]   # (s, 3e) f32
    qkv_b = qkv.astype(jnp.bfloat16)                                  # bf16 matmul operands

    # Per-head attention; each head's (s, hd) result goes straight into the f32
    # scratch slab at its column offset (no outs list / trailing lane concat).
    # n_heads is tiny -> small unrolled Python loop.
    for h in range(n_heads):
        lo = h * head_dim
        q_h = qkv_b[:, lo:lo + head_dim]                                   # (s, hd)
        k_h = qkv_b[:, embed_dim + lo:embed_dim + lo + head_dim]           # (s, hd)
        v_h = qkv_b[:, 2 * embed_dim + lo:2 * embed_dim + lo + head_dim]   # (s, hd)

        # scores = q @ k^T, contracting on the last dim (no explicit transpose).
        # NOTE: the reference applies NO 1/sqrt(d) scale -- do not "fix" this.
        scores = lax.dot_general(
            q_h, k_h, (((1,), (1,)), ((), ())),
            preferred_element_type=jnp.float32)                       # (s, s) f32

        # Softmax math in f32 (required on v5e: no bf16 VPU/EUP).
        m_row = jnp.max(scores, axis=-1, keepdims=True)
        p = jnp.exp(scores - m_row)                                   # (s, s) f32, unnormalized
        inv = pl.reciprocal(jnp.sum(p, axis=-1, keepdims=True), approx=True)

        # Normalization folded into the (s, hd) output instead of the (s, s) tile.
        slab_ref[:, lo:lo + head_dim] = jnp.dot(
            p.astype(jnp.bfloat16), v_h,
            preferred_element_type=jnp.float32) * inv

    # Single lane-dense cast+store of the full (s, e) output slab.
    o_ref[...] = slab_ref[...].astype(o_ref.dtype)


def fuse_qkv_params(wq, bq, wk, bk, wv, bv):
    """One-time parameter prep (hoisted out of the per-call path): fuse Q/K/V
    weights into one (e, 3e) bf16 matrix and the biases into one (1, 3e) f32 row."""
    w_qkv = jnp.concatenate([wq, wk, wv], axis=1).astype(jnp.bfloat16)   # (e, 3e)
    b_qkv = jnp.concatenate([bq, bk, bv], axis=1).astype(jnp.float32)    # (1, 3e)
    return w_qkv, b_qkv


def _vmem_limit_bytes(s, e, out_itemsize):
    """Scoped-VMEM budget from the actual block sizes + headroom (not a fixed 32 MiB)."""
    x_blk = 2 * s * e * 4                 # f32 input block, double-buffered
    w_blk = 1 * e * (3 * e) * 2           # bf16 fused weights, single-buffered
    b_blk = 1 * (3 * e) * 4               # f32 fused bias, single-buffered
    o_blk = 2 * s * e * out_itemsize      # output block, double-buffered
    slab = s * e * 4                      # f32 scratch slab
    # In-kernel temporaries: qkv (f32 + bf16 copy) and one (s, s) score tile plus
    # its exp copy (heads are processed sequentially, so only one is live).
    tmp = s * (3 * e) * (4 + 2) + 2 * s * s * 4
    headroom = 8 * 1024 * 1024            # compiler-internal scratch
    # Clamp below v7x's 64 MiB physical VMEM.
    return min(x_blk + w_blk + b_blk + o_blk + slab + tmp + headroom,
               48 * 1024 * 1024)


def self_attention(x, w_qkv, b_qkv, *, n_heads):
    """x: (m, s, e) float32; w_qkv: (e, 3e) bf16 stored (in, out); b_qkv: (1, 3e) f32."""
    m, s, e = x.shape
    head_dim = e // n_heads
    out_dtype = x.dtype

    kernel = functools.partial(_self_attention_kernel,
                               n_heads=n_heads, head_dim=head_dim, embed_dim=e)

    # Grid-invariant operands: their index_map is constant over the batch grid,
    # so double-buffering buys nothing -- keep one buffer each.
    resident = dict(pipeline_mode=pl.Buffered(1))

    return pl.pallas_call(
        kernel,
        out_shape=jax.ShapeDtypeStruct((m, s, e), out_dtype),
        grid_spec=pltpu.PrefetchScalarGridSpec(
            num_scalar_prefetch=0,
            grid=(m,),
            in_specs=[
                pl.BlockSpec((pl.Squeezed(), s, e), lambda b: (b, 0, 0)),   # x (f32)
                pl.BlockSpec((e, 3 * e), lambda b: (0, 0), **resident),     # W_qkv (bf16)
                pl.BlockSpec((1, 3 * e), lambda b: (0, 0), **resident),     # b_qkv (f32)
            ],
            out_specs=pl.BlockSpec((pl.Squeezed(), s, e), lambda b: (b, 0, 0)),
            scratch_shapes=[pltpu.VMEM((s, e), jnp.float32)],               # head-output slab
        ),
        compiler_params=pltpu.CompilerParams(
            dimension_semantics=("parallel",),
            vmem_limit_bytes=_vmem_limit_bytes(s, e, jnp.dtype(out_dtype).itemsize)),
    )(x, w_qkv, b_qkv)


def self_attention_ref(x, wq, bq, wk, bk, wv, bv, *, n_heads):
    """Pure-JAX f32 reference mirroring the PyTorch forward."""
    m, s, e = x.shape
    hd = e // n_heads
    q = x @ wq + bq[0]
    k = x @ wk + bk[0]
    v = x @ wv + bv[0]
    q = q.reshape(m, s, n_heads, hd).transpose(0, 2, 1, 3).reshape(-1, s, hd)
    k = k.reshape(m, s, n_heads, hd).transpose(0, 2, 1, 3).reshape(-1, s, hd)
    v = v.reshape(m, s, n_heads, hd).transpose(0, 2, 1, 3).reshape(-1, s, hd)
    attn = jax.nn.softmax(jnp.einsum('bqd,bkd->bqk', q, k), axis=-1)
    o = jnp.einsum('bqk,bkd->bqd', attn, v)
    o = o.reshape(m, n_heads, s, hd).transpose(0, 2, 1, 3).reshape(m, s, e)
    return o


if __name__ == "__main__":
    # Small shapes consistent with the module: batch=2, seq=8, embed=32, heads=4.
    m, s, e, n_heads = 2, 8, 32, 4

    key = jax.random.PRNGKey(0)
    kx, kq, kbq, kk, kbk, kv, kbv = jax.random.split(key, 7)

    x = jax.random.normal(kx, (m, s, e), dtype=jnp.float32)
    scale = 1.0 / jnp.sqrt(jnp.float32(e))
    wq = jax.random.uniform(kq, (e, e), jnp.float32, -scale, scale)
    bq = jax.random.uniform(kbq, (1, e), jnp.float32, -scale, scale)
    wk = jax.random.uniform(kk, (e, e), jnp.float32, -scale, scale)
    bk = jax.random.uniform(kbk, (1, e), jnp.float32, -scale, scale)
    wv = jax.random.uniform(kv, (e, e), jnp.float32, -scale, scale)
    bv = jax.random.uniform(kbv, (1, e), jnp.float32, -scale, scale)

    # One-time parameter prep (NOT part of the per-call path).
    w_qkv, b_qkv = fuse_qkv_params(wq, bq, wk, bk, wv, bv)
    w_qkv, b_qkv = jax.block_until_ready((w_qkv, b_qkv))

    out = self_attention(x, w_qkv, b_qkv, n_heads=n_heads)
    out = jax.block_until_ready(out)

    ref = self_attention_ref(x, wq, bq, wk, bk, wv, bv, n_heads=n_heads)
    assert out.shape == (m, s, e)
    # Tolerance absorbs bf16 MXU operands + the approximate EUP reciprocal in the
    # softmax denominator (flag if reused for training / tight-accuracy inference).
    assert jnp.allclose(out, ref, atol=2e-2, rtol=2e-2), "mismatch vs reference"

    print("KERNEL_OK")
</pallas_src>

<mosaic_0001>
module attributes {stable_mosaic.version = 11 : i64} {
  func.func @_self_attention_kernel(%arg0: i32, %arg1: memref<1x8x32xf32, #tpu.memory_space<vmem>>, %arg2: memref<32x96xbf16, #tpu.memory_space<vmem>>, %arg3: memref<1x96xf32, #tpu.memory_space<vmem>>, %arg4: memref<1x8x32xf32, #tpu.memory_space<vmem>>, %arg5: memref<8x32xf32, #tpu.memory_space<vmem>>) attributes {dimension_semantics = [#tpu.dimension_semantics<parallel>], iteration_bounds = array<i64: 2>, scalar_prefetch = 0 : i64, scratch_operands = 1 : i64, tpu.core_type = #tpu.core_type<tc>, window_params = [{transform_indices = @transform_0, window_bounds = array<i64: 1, 8, 32>}, {pipeline_mode = #tpu.pipeline_mode<synchronous>, transform_indices = @transform_1, window_bounds = array<i64: 32, 96>}, {pipeline_mode = #tpu.pipeline_mode<synchronous>, transform_indices = @transform_2, window_bounds = array<i64: 1, 96>}, {transform_indices = @transform_3, window_bounds = array<i64: 1, 8, 32>}]} {
    %c0 = arith.constant 0 : index
    %c0_0 = arith.constant 0 : index
    %c0_1 = arith.constant 0 : index
    %0 = vector.load %arg1[%c0, %c0_0, %c0_1] : memref<1x8x32xf32, #tpu.memory_space<vmem>>, vector<1x8x32xf32>
    %1 = vector.shape_cast %0 : vector<1x8x32xf32> to vector<8x32xf32>
    %2 = arith.truncf %1 : vector<8x32xf32> to vector<8x32xbf16>
    %c0_2 = arith.constant 0 : index
    %c0_3 = arith.constant 0 : index
    %3 = vector.load %arg2[%c0_2, %c0_3] : memref<32x96xbf16, #tpu.memory_space<vmem>>, vector<32x96xbf16>
    %cst = arith.constant dense<0.000000e+00> : vector<8x96xf32>
    %4 = tpu.matmul %2, %3, %cst {dimension_numbers = #tpu.dot_dimension_numbers<[1], [0], [0], [1], [0, 0, 1, 1], [], []>} : vector<8x32xbf16>, vector<32x96xbf16>, vector<8x96xf32> -> vector<8x96xf32>
    %c0_4 = arith.constant 0 : index
    %c0_5 = arith.constant 0 : index
    %5 = vector.load %arg3[%c0_4, %c0_5] : memref<1x96xf32, #tpu.memory_space<vmem>>, vector<1x96xf32>
    %6 = vector.broadcast %5 : vector<1x96xf32> to vector<8x96xf32>
    %7 = arith.addf %4, %6 : vector<8x96xf32>
    %8 = arith.truncf %7 : vector<8x96xf32> to vector<8x96xbf16>
    %9 = vector.extract_strided_slice %8 {offsets = [0, 0], sizes = [8, 8], strides = [1, 1]} : vector<8x96xbf16> to vector<8x8xbf16>
    %10 = vector.extract_strided_slice %8 {offsets = [0, 32], sizes = [8, 8], strides = [1, 1]} : vector<8x96xbf16> to vector<8x8xbf16>
    %11 = vector.extract_strided_slice %8 {offsets = [0, 64], sizes = [8, 8], strides = [1, 1]} : vector<8x96xbf16> to vector<8x8xbf16>
    %cst_6 = arith.constant dense<0.000000e+00> : vector<8x8xf32>
    %12 = tpu.matmul %9, %10, %cst_6 {dimension_numbers = #tpu.dot_dimension_numbers<[1], [1], [0], [0], [0, 0, 1, 0], [], []>} : vector<8x8xbf16>, vector<8x8xbf16>, vector<8x8xf32> -> vector<8x8xf32>
    %cst_7 = arith.constant dense<0xFF800000> : vector<8xf32>
    %13 = vector.multi_reduction <maximumf>, %12, %cst_7 [1] : vector<8x8xf32> to vector<8xf32>
    %14 = vector.shape_cast %13 : vector<8xf32> to vector<8x1xf32>
    %15 = vector.broadcast %14 : vector<8x1xf32> to vector<8x8xf32>
    %16 = arith.subf %12, %15 : vector<8x8xf32>
    %17 = math.exp %16 : vector<8x8xf32>
    %cst_8 = arith.constant dense<0.000000e+00> : vector<8xf32>
    %18 = vector.multi_reduction <add>, %17, %cst_8 [1] : vector<8x8xf32> to vector<8xf32>
    %19 = vector.shape_cast %18 : vector<8xf32> to vector<8x1xf32>
    %20 = tpu.reciprocal %19 {approx = true} : vector<8x1xf32> -> vector<8x1xf32>
    %21 = arith.truncf %17 : vector<8x8xf32> to vector<8x8xbf16>
    %cst_9 = arith.constant dense<0.000000e+00> : vector<8x8xf32>
    %22 = tpu.matmul %21, %11, %cst_9 {dimension_numbers = #tpu.dot_dimension_numbers<[1], [0], [0], [1], [0, 0, 1, 1], [], []>} : vector<8x8xbf16>, vector<8x8xbf16>, vector<8x8xf32> -> vector<8x8xf32>
    %23 = vector.broadcast %20 : vector<8x1xf32> to vector<8x8xf32>
    %24 = arith.mulf %22, %23 : vector<8x8xf32>
    %c0_10 = arith.constant 0 : index
    %c0_11 = arith.constant 0 : index
    %25 = vector.load %arg5[%c0_10, %c0_11] : memref<8x32xf32, #tpu.memory_space<vmem>>, vector<8x8xf32>
    tpu.vector_store %arg5[%c0_10, %c0_11], %24 {strides = array<i32>} : memref<8x32xf32, #tpu.memory_space<vmem>>, vector<8x8xf32>,
    %26 = vector.extract_strided_slice %8 {offsets = [0, 8], sizes = [8, 8], strides = [1, 1]} : vector<8x96xbf16> to vector<8x8xbf16>
    %27 = vector.extract_strided_slice %8 {offsets = [0, 40], sizes = [8, 8], strides = [1, 1]} : vector<8x96xbf16> to vector<8x8xbf16>
    %28 = vector.extract_strided_slice %8 {offsets = [0, 72], sizes = [8, 8], strides = [1, 1]} : vector<8x96xbf16> to vector<8x8xbf16>
    %cst_12 = arith.constant dense<0.000000e+00> : vector<8x8xf32>
    %29 = tpu.matmul %26, %27, %cst_12 {dimension_numbers = #tpu.dot_dimension_numbers<[1], [1], [0], [0], [0, 0, 1, 0], [], []>} : vector<8x8xbf16>, vector<8x8xbf16>, vector<8x8xf32> -> vector<8x8xf32>
    %cst_13 = arith.constant dense<0xFF800000> : vector<8xf32>
    %30 = vector.multi_reduction <maximumf>, %29, %cst_13 [1] : vector<8x8xf32> to vector<8xf32>
    %31 = vector.shape_cast %30 : vector<8xf32> to vector<8x1xf32>
    %32 = vector.broadcast %31 : vector<8x1xf32> to vector<8x8xf32>
    %33 = arith.subf %29, %32 : vector<8x8xf32>
    %34 = math.exp %33 : vector<8x8xf32>
    %cst_14 = arith.constant dense<0.000000e+00> : vector<8xf32>
    %35 = vector.multi_reduction <add>, %34, %cst_14 [1] : vector<8x8xf32> to vector<8xf32>
    %36 = vector.shape_cast %35 : vector<8xf32> to vector<8x1xf32>
    %37 = tpu.reciprocal %36 {approx = true} : vector<8x1xf32> -> vector<8x1xf32>
    %38 = arith.truncf %34 : vector<8x8xf32> to vector<8x8xbf16>
    %cst_15 = arith.constant dense<0.000000e+00> : vector<8x8xf32>
    %39 = tpu.matmul %38, %28, %cst_15 {dimension_numbers = #tpu.dot_dimension_numbers<[1], [0], [0], [1], [0, 0, 1, 1], [], []>} : vector<8x8xbf16>, vector<8x8xbf16>, vector<8x8xf32> -> vector<8x8xf32>
    %40 = vector.broadcast %37 : vector<8x1xf32> to vector<8x8xf32>
    %41 = arith.mulf %39, %40 : vector<8x8xf32>
    %c0_16 = arith.constant 0 : index
    %c8 = arith.constant 8 : index
    %42 = vector.load %arg5[%c0_16, %c8] : memref<8x32xf32, #tpu.memory_space<vmem>>, vector<8x8xf32>
    tpu.vector_store %arg5[%c0_16, %c8], %41 {strides = array<i32>} : memref<8x32xf32, #tpu.memory_space<vmem>>, vector<8x8xf32>,
    %43 = vector.extract_strided_slice %8 {offsets = [0, 16], sizes = [8, 8], strides = [1, 1]} : vector<8x96xbf16> to vector<8x8xbf16>
    %44 = vector.extract_strided_slice %8 {offsets = [0, 48], sizes = [8, 8], strides = [1, 1]} : vector<8x96xbf16> to vector<8x8xbf16>
    %45 = vector.extract_strided_slice %8 {offsets = [0, 80], sizes = [8, 8], strides = [1, 1]} : vector<8x96xbf16> to vector<8x8xbf16>
    %cst_17 = arith.constant dense<0.000000e+00> : vector<8x8xf32>
    %46 = tpu.matmul %43, %44, %cst_17 {dimension_numbers = #tpu.dot_dimension_numbers<[1], [1], [0], [0], [0, 0, 1, 0], [], []>} : vector<8x8xbf16>, vector<8x8xbf16>, vector<8x8xf32> -> vector<8x8xf32>
    %cst_18 = arith.constant dense<0xFF800000> : vector<8xf32>
    %47 = vector.multi_reduction <maximumf>, %46, %cst_18 [1] : vector<8x8xf32> to vector<8xf32>
    %48 = vector.shape_cast %47 : vector<8xf32> to vector<8x1xf32>
    %49 = vector.broadcast %48 : vector<8x1xf32> to vector<8x8xf32>
    %50 = arith.subf %46, %49 : vector<8x8xf32>
    %51 = math.exp %50 : vector<8x8xf32>
    %cst_19 = arith.constant dense<0.000000e+00> : vector<8xf32>
    %52 = vector.multi_reduction <add>, %51, %cst_19 [1] : vector<8x8xf32> to vector<8xf32>
    %53 = vector.shape_cast %52 : vector<8xf32> to vector<8x1xf32>
    %54 = tpu.reciprocal %53 {approx = true} : vector<8x1xf32> -> vector<8x1xf32>
    %55 = arith.truncf %51 : vector<8x8xf32> to vector<8x8xbf16>
    %cst_20 = arith.constant dense<0.000000e+00> : vector<8x8xf32>
    %56 = tpu.matmul %55, %45, %cst_20 {dimension_numbers = #tpu.dot_dimension_numbers<[1], [0], [0], [1], [0, 0, 1, 1], [], []>} : vector<8x8xbf16>, vector<8x8xbf16>, vector<8x8xf32> -> vector<8x8xf32>
    %57 = vector.broadcast %54 : vector<8x1xf32> to vector<8x8xf32>
    %58 = arith.mulf %56, %57 : vector<8x8xf32>
    %c0_21 = arith.constant 0 : index
    %c16 = arith.constant 16 : index
    %59 = vector.load %arg5[%c0_21, %c16] : memref<8x32xf32, #tpu.memory_space<vmem>>, vector<8x8xf32>
    tpu.vector_store %arg5[%c0_21, %c16], %58 {strides = array<i32>} : memref<8x32xf32, #tpu.memory_space<vmem>>, vector<8x8xf32>,
    %60 = vector.extract_strided_slice %8 {offsets = [0, 24], sizes = [8, 8], strides = [1, 1]} : vector<8x96xbf16> to vector<8x8xbf16>
    %61 = vector.extract_strided_slice %8 {offsets = [0, 56], sizes = [8, 8], strides = [1, 1]} : vector<8x96xbf16> to vector<8x8xbf16>
    %62 = vector.extract_strided_slice %8 {offsets = [0, 88], sizes = [8, 8], strides = [1, 1]} : vector<8x96xbf16> to vector<8x8xbf16>
    %cst_22 = arith.constant dense<0.000000e+00> : vector<8x8xf32>
    %63 = tpu.matmul %60, %61, %cst_22 {dimension_numbers = #tpu.dot_dimension_numbers<[1], [1], [0], [0], [0, 0, 1, 0], [], []>} : vector<8x8xbf16>, vector<8x8xbf16>, vector<8x8xf32> -> vector<8x8xf32>
    %cst_23 = arith.constant dense<0xFF800000> : vector<8xf32>
    %64 = vector.multi_reduction <maximumf>, %63, %cst_23 [1] : vector<8x8xf32> to vector<8xf32>
    %65 = vector.shape_cast %64 : vector<8xf32> to vector<8x1xf32>
    %66 = vector.broadcast %65 : vector<8x1xf32> to vector<8x8xf32>
    %67 = arith.subf %63, %66 : vector<8x8xf32>
    %68 = math.exp %67 : vector<8x8xf32>
    %cst_24 = arith.constant dense<0.000000e+00> : vector<8xf32>
    %69 = vector.multi_reduction <add>, %68, %cst_24 [1] : vector<8x8xf32> to vector<8xf32>
    %70 = vector.shape_cast %69 : vector<8xf32> to vector<8x1xf32>
    %71 = tpu.reciprocal %70 {approx = true} : vector<8x1xf32> -> vector<8x1xf32>
    %72 = arith.truncf %68 : vector<8x8xf32> to vector<8x8xbf16>
    %cst_25 = arith.constant dense<0.000000e+00> : vector<8x8xf32>
    %73 = tpu.matmul %72, %62, %cst_25 {dimension_numbers = #tpu.dot_dimension_numbers<[1], [0], [0], [1], [0, 0, 1, 1], [], []>} : vector<8x8xbf16>, vector<8x8xbf16>, vector<8x8xf32> -> vector<8x8xf32>
    %74 = vector.broadcast %71 : vector<8x1xf32> to vector<8x8xf32>
    %75 = arith.mulf %73, %74 : vector<8x8xf32>
    %c0_26 = arith.constant 0 : index
    %c24 = arith.constant 24 : index
    %76 = vector.load %arg5[%c0_26, %c24] : memref<8x32xf32, #tpu.memory_space<vmem>>, vector<8x8xf32>
    tpu.vector_store %arg5[%c0_26, %c24], %75 {strides = array<i32>} : memref<8x32xf32, #tpu.memory_space<vmem>>, vector<8x8xf32>,
    %c0_27 = arith.constant 0 : index
    %c0_28 = arith.constant 0 : index
    %77 = vector.load %arg5[%c0_27, %c0_28] : memref<8x32xf32, #tpu.memory_space<vmem>>, vector<8x32xf32>
    %c0_29 = arith.constant 0 : index
    %c0_30 = arith.constant 0 : index
    %c0_31 = arith.constant 0 : index
    %78 = vector.load %arg4[%c0_29, %c0_30, %c0_31] : memref<1x8x32xf32, #tpu.memory_space<vmem>>, vector<1x8x32xf32>
    %79 = vector.shape_cast %78 : vector<1x8x32xf32> to vector<8x32xf32>
    %80 = vector.shape_cast %77 : vector<8x32xf32> to vector<1x8x32xf32>
    tpu.vector_store %arg4[%c0_29, %c0_30, %c0_31], %80 {strides = array<i32>} : memref<1x8x32xf32, #tpu.memory_space<vmem>>, vector<1x8x32xf32>,
    return
  }
  func.func @transform_0(%arg0: i32) -> (i32, i32, i32) {
    %c0_i32 = arith.constant 0 : i32
    %c0_i32_0 = arith.constant 0 : i32
    %c0_i32_1 = arith.constant 0 : i32
    return %arg0, %c0_i32, %c0_i32_0 : i32, i32, i32
  }
  func.func @transform_1(%arg0: i32) -> (i32, i32) {
    %c0_i32 = arith.constant 0 : i32
    %c0_i32_0 = arith.constant 0 : i32
    %c0_i32_1 = arith.constant 0 : i32
    return %c0_i32, %c0_i32_0 : i32, i32
  }
  func.func @transform_2(%arg0: i32) -> (i32, i32) {
    %c0_i32 = arith.constant 0 : i32
    %c0_i32_0 = arith.constant 0 : i32
    %c0_i32_1 = arith.constant 0 : i32
    return %c0_i32, %c0_i32_0 : i32, i32
  }
  func.func @transform_3(%arg0: i32) -> (i32, i32, i32) {
    %c0_i32 = arith.constant 0 : i32
    %c0_i32_0 = arith.constant 0 : i32
    %c0_i32_1 = arith.constant 0 : i32
    return %arg0, %c0_i32, %c0_i32_0 : i32, i32, i32
  }
}

</mosaic_0001>

<llo_original>
// kernel: tpu_custom_call.1
$region0: #{tpu_custom_call.1}
  #allocation0 [shape = 'u32[]', space=smem, size = 0x4, offset = 0x4, fixed_abs, tag = 'smem constant byte address 0x4 - core index']
  #allocation1 [shape = 'u32[144,128]{1,0:T(1,128)}', space=vmem, size = 0x12000, scoped, tag = 'internal scratch']
  #allocation2 [shape = 'f32[8,32]{1,0:T(8,128)}', space=vmem, size = 0x1000, scoped, tag = 'scratch operand']
  %s0 = inlined_call_operand.hbm [shape: f32[2,8,32], index: 0, kind: input, shape index: {}]
  %s1 = inlined_call_operand.hbm [shape: bf16[32,96], index: 1, kind: input, shape index: {}]
  %s2 = inlined_call_operand.vmem [shape: f32[1,96], index: 2, kind: input, shape index: {}]
  %s3 = inlined_call_operand.hbm [shape: f32[2,8,32], index: 3, kind: output, shape index: {}]
  %s4 = sld [smem:[#allocation0]]
  $region53: #{tpu_custom_call.1} parent=0
    _
  %s6 = ssub.s32 1, %s4
  %s7 = scalar_select 0, %s6, %s4
  $region1: #{tpu_custom_call.1} parent=0
    #allocation3 [shape = 'u8[8192]{0}', space=vmem, size = 0x2000, scoped, tag = 'input window, operand 0']
    #allocation4 [shape = 's32[2]{0}', space=sflag, size = 0x8, scoped, tag = 'scoped memory for tpu_custom_call.1']
    #allocation5 [shape = 's32[2]{0}', space=sflag, size = 0x8, scoped, tag = 'scoped memory for tpu_custom_call.1']
    #allocation6 [shape = 'u8[8192]{0}', space=vmem, size = 0x2000, scoped, tag = 'input window, operand 1, single buffered']
    #allocation7 [shape = 's32[1]{0}', space=sflag, size = 0x4, scoped, tag = 'scoped memory for tpu_custom_call.1']
    #allocation8 [shape = 'u8[8192]{0}', space=vmem, size = 0x2000, scoped, tag = 'output window, operand 0']
    %8 = vsyncpa [#allocation4], 0
    %s9 = scalar_lea.sflag [#allocation4], 1
    %10 = vsyncpa %s9, 0
    %11 = vsyncpa [#allocation7], 0
    %12 = vsyncpa [#allocation5], 0
    %s13 = scalar_lea.sflag [#allocation5], 1
    %14 = vsyncpa %s13, 0
    loop: start=0, step=1, limit=4
    $region2: #{tpu_custom_call.1} parent=1 // loop_pre_header
      _
    $region3: #{tpu_custom_call.1} parent=1 // loop_header
      %s16 = sphi 0, %s20
      %p17 = scmp.ge.s32.totalorder %s16, 4
      %s26 = sphi 0, %s28
      %s29 = sphi 0, %s26
      %s30 = sphi 0, %s29
      %s46 = sphi 0, %s30
      %s50 = sphi 0, %s50
      %s52 = sphi 0, %s50
      %s53 = sphi 0, %s52
      %s67 = sphi 0, %s53
      %s71 = sphi 0, %s71
      %s73 = sphi 0, %s71
      %s74 = sphi 0, %s73
      %s88 = sphi 0, %s74
      %s94 = sphi 0, %s96
      %s97 = sphi 0, %s94
      %s98 = sphi 0, %s97
      %s114 = sphi 0, %s98
    $region4: #{tpu_custom_call.1} parent=1 // loop_header_branch
      %19 = sbr.rel (%p17) target = $region8
    $region5: #{tpu_custom_call.1} parent=1 // loop_body
      %s21 = ssub.s32 %s16, 1
      %s22 = ssub.s32 %s16, 2
      %s23 = sadd.s32 %s16, 1
      %s24 = ssub.s32 %s16, %s23
      %p25 = scmp.eq.s32.totalorder %s24, 0
      %s27 = sadd.s32 %s26, 1
      %s28 = scalar_select %p25, %s26, %s27
      %p31 = pneg %p25
      %p32 = scmp.eq.s32.totalorder %s16, 1
      %p33 = por %p31, %p32
      %p34 = scmp.ne.s32.totalorder %s26, %s29
      %p35 = scmp.eq.s32.totalorder %s16, 0
      %p36 = por %p34, %p35
      %p37 = scmp.ne.s32.totalorder %s26, %s29
      %p38 = scmp.eq.s32.totalorder %s21, 1
      %p39 = por %p37, %p38
      %p40 = scmp.ne.s32.totalorder %s29, %s30
      %p41 = scmp.eq.s32.totalorder %s21, 0
      %p42 = por %p40, %p41
      %p43 = scmp.ne.s32.totalorder %s29, %s30
      %p44 = scmp.eq.s32.totalorder %s22, 1
      %p45 = por %p43, %p44
      %p47 = scmp.ne.s32.totalorder %s30, %s46
      %p48 = scmp.eq.s32.totalorder %s22, 0
      %p49 = por %p47, %p48
      %s51 = sadd.s32 %s50, 1
      %p54 = scmp.eq.s32.totalorder %s16, 1
      %p55 = scmp.ne.s32.totalorder %s50, %s52
      %p56 = scmp.eq.s32.totalorder %s16, 0
      %p57 = por %p55, %p56
      %p58 = scmp.ne.s32.totalorder %s50, %s52
      %p59 = scmp.eq.s32.totalorder %s21, 1
      %p60 = por %p58, %p59
      %p61 = scmp.ne.s32.totalorder %s52, %s53
      %p62 = scmp.eq.s32.totalorder %s21, 0
      %p63 = por %p61, %p62
      %p64 = scmp.ne.s32.totalorder %s52, %s53
      %p65 = scmp.eq.s32.totalorder %s22, 1
      %p66 = por %p64, %p65
      %p68 = scmp.ne.s32.totalorder %s53, %s67
      %p69 = scmp.eq.s32.totalorder %s22, 0
      %p70 = por %p68, %p69
      %s72 = sadd.s32 %s71, 1
      %p75 = scmp.eq.s32.totalorder %s16, 1
      %p76 = scmp.ne.s32.totalorder %s71, %s73
      %p77 = scmp.eq.s32.totalorder %s16, 0
      %p78 = por %p76, %p77
      %p79 = scmp.ne.s32.totalorder %s71, %s73
      %p80 = scmp.eq.s32.totalorder %s21, 1
      %p81 = por %p79, %p80
      %p82 = scmp.ne.s32.totalorder %s73, %s74
      %p83 = scmp.eq.s32.totalorder %s21, 0
      %p84 = por %p82, %p83
      %p85 = scmp.ne.s32.totalorder %s73, %s74
      %p86 = scmp.eq.s32.totalorder %s22, 1
      %p87 = por %p85, %p86
      %p89 = scmp.ne.s32.totalorder %s74, %s88
      %p90 = scmp.eq.s32.totalorder %s22, 0
      %p91 = por %p89, %p90
      %s92 = ssub.s32 %s16, %s23
      %p93 = scmp.eq.s32.totalorder %s92, 0
      %s95 = sadd.s32 %s94, 1
      %s96 = scalar_select %p93, %s94, %s95
      %p99 = pneg %p93
      %p100 = scmp.eq.s32.totalorder %s16, 1
      %p101 = por %p99, %p100
      %p102 = scmp.ne.s32.totalorder %s94, %s97
      %p103 = scmp.eq.s32.totalorder %s16, 0
      %p104 = por %p102, %p103
      %p105 = scmp.ne.s32.totalorder %s94, %s97
      %p106 = scmp.eq.s32.totalorder %s21, 1
      %p107 = por %p105, %p106
      %p108 = scmp.ne.s32.totalorder %s97, %s98
      %p109 = scmp.eq.s32.totalorder %s21, 0
      %p110 = por %p108, %p109
      %p111 = scmp.ne.s32.totalorder %s97, %s98
      %p112 = scmp.eq.s32.totalorder %s22, 1
      %p113 = por %p111, %p112
      %p115 = scmp.ne.s32.totalorder %s98, %s114
      %p116 = scmp.eq.s32.totalorder %s22, 0
      %p117 = por %p115, %p116
      %p118 = scmp.le.s32.totalorder 1, %s16
      %p119 = scmp.lt.s32.totalorder %s16, 3
      %p120 = pnand %p118, %p119
      %p121 = pneg %p120
      // Predicated region
      $region9: #{tpu_custom_call.1} parent=5 // pred_check
        _
      $region10: #{tpu_custom_call.1} parent=5 // pred_check_branch
        %123 = sbr.rel (%p120) target = $region12
      $region11: #{tpu_custom_call.1} parent=5 // pred_region
        %s124 = ssub.s32 %s16, 1
        // Predicated region
        $region13: #{tpu_custom_call.1} parent=11 // pred_check
          %p125 = pneg %p63
        $region14: #{tpu_custom_call.1} parent=11 // pred_check_branch
          %127 = sbr.rel (%p125) target = $region16
        $region15: #{tpu_custom_call.1} parent=11 // pred_region
          %s129 = ssub.s32 256, 256
          %130 = vsyncadd [#allocation7], %s129
          %s131 = sshll.u32 [#allocation6], 4
          %s132 = int_to_ptr.vmem [resolvable:$true] %s131
          %137 = dma.hbm_to_vmem [thread:$0]  %s1, 256, %s132, [#allocation7], 64, 64, 4
        $region16: #{tpu_custom_call.1} parent=11 // pred_fallthru
          _
        // Predicated region
        $region17: #{tpu_custom_call.1} parent=11 // pred_check
          %p138 = pneg %p84
        $region18: #{tpu_custom_call.1} parent=11 // pred_check_branch
          %140 = sbr.rel (%p138) target = $region20
        $region19: #{tpu_custom_call.1} parent=11 // pred_region
          _
        $region20: #{tpu_custom_call.1} parent=11 // pred_fallthru
          _
      $region12: #{tpu_custom_call.1} parent=5 // pred_fallthru
        _
      %p141 = scmp.lt.s32.totalorder %s16, 2
      // Predicated region
      $region21: #{tpu_custom_call.1} parent=5 // pred_check
        %p142 = pneg %p141
      $region22: #{tpu_custom_call.1} parent=5 // pred_check_branch
        %144 = sbr.rel (%p142) target = $region24
      $region23: #{tpu_custom_call.1} parent=5 // pred_region
        // Predicated region
        $region25: #{tpu_custom_call.1} parent=23 // pred_check
          %p145 = pneg %p36
        $region26: #{tpu_custom_call.1} parent=23 // pred_check_branch
          %147 = sbr.rel (%p145) target = $region28
        $region27: #{tpu_custom_call.1} parent=23 // pred_region
          %s148 = sand.u32 %s26, 1
          %s149 = scalar_lea.sflag [#allocation4], %s148
          %s150 = sand.u32 %s26, 1
          %s151 = smul.addr %s150, 8
          %s152 = scalar_lea.vmem [#allocation3], %s151
          %s154 = ssub.s32 128, 128
          %155 = vsyncadd %s149, %s154
          %s156 = smul.addr %s16, 128
          %s157 = scalar_lea.hbm %s0, %s156
          %s159 = sshll.u32 %s152, 4
          %s160 = int_to_ptr.vmem [resolvable:$true] %s159
          %162 = dma.hbm_to_vmem [thread:$0]  %s157, 128, %s160, %s149
        $region28: #{tpu_custom_call.1} parent=23 // pred_fallthru
          _
      $region24: #{tpu_custom_call.1} parent=5 // pred_fallthru
        _
      %p163 = scmp.le.s32.totalorder 1, %s16
      %p164 = scmp.lt.s32.totalorder %s16, 3
      %p165 = pnand %p163, %p164
      %p166 = pneg %p165
      // Predicated region
      $region29: #{tpu_custom_call.1} parent=5 // pred_check
        _
      $region30: #{tpu_custom_call.1} parent=5 // pred_check_branch
        %168 = sbr.rel (%p165) target = $region32
      $region31: #{tpu_custom_call.1} parent=5 // pred_region
        %s169 = ssub.s32 %s16, 1
        %s170 = sand.u32 %s29, 1
        %s171 = scalar_lea.sflag [#allocation4], %s170
        %s172 = sand.u32 %s29, 1
        %s173 = smul.addr %s172, 8
        %s174 = scalar_lea.vmem [#allocation3], %s173
        // Predicated region
        $region33: #{tpu_custom_call.1} parent=31 // pred_check
          %p175 = pneg %p42
        $region34: #{tpu_custom_call.1} parent=31 // pred_check_branch
          %177 = sbr.rel (%p175) target = $region36
        $region35: #{tpu_custom_call.1} parent=31 // pred_region
          %178 = dma.done %s171, 128
        $region36: #{tpu_custom_call.1} parent=31 // pred_fallthru
          _
        // Predicated region
        $region37: #{tpu_custom_call.1} parent=31 // pred_check
          %p179 = pneg %p63
        $region38: #{tpu_custom_call.1} parent=31 // pred_check_branch
          %181 = sbr.rel (%p179) target = $region40
        $region39: #{tpu_custom_call.1} parent=31 // pred_region
          %182 = dma.done [#allocation7], 256
        $region40: #{tpu_custom_call.1} parent=31 // pred_fallthru
          _
        %s183 = sand.u32 %s29, 1
        %s184 = scalar_lea.sflag [#allocation4], %s183
        %s185 = sand.u32 %s29, 1
        %s186 = smul.addr %s185, 8
        %s187 = scalar_lea.vmem [#allocation3], %s186
        %p188 = pneg %p42
        %p189 = pneg %p39
        %p190 = pneg %p63
        %p191 = pneg %p60
        %p192 = pneg %p84
        %p193 = pneg %p81
        %p194 = pneg %p110
        %p195 = pneg %p107
        %s196 = sand.u32 %s97, 1
        %s197 = scalar_lea.sflag [#allocation5], %s196
        %s198 = sand.u32 %s97, 1
        %s199 = smul.addr %s198, 8
        %s200 = scalar_lea.vmem [#allocation8], %s199
        %v202 = vld [vmem:[%s174] sm:$0xff]
        %v203 = vpack.c.bf16 %v202, %v202
        %v204 = vld [vmem:[#allocation6] sm:$0xf]
        %v205 = vld [vmem:[#allocation6 + $0x4] sm:$0xf]
        %v206 = vld [vmem:[#allocation6 + $0x8] sm:$0xf]
        %v207 = vld [vmem:[#allocation6 + $0xc] sm:$0xf]
        %v208 = vld [vmem:[%s2] sm:$0x1]
        %v210 = vlaneseq
        %v211 = vshrl.u32 %v210, 7
        %v212 = vsub.s32 0, %v211
        %v213 = vrot.slane %v208, %v212
        %v219 = vunpack.c.l.b16 %v204
        %v220 = vunpack.c.l.b16 %v205
        %v221 = vunpack.c.l.b16 %v206
        %v222 = vunpack.c.l.b16 %v207
        %v223 = vpack.c.b16 %v220, %v219
        %v224 = vpack.c.b16 %v222, %v221
        %vm227 = vcmask 261120
        %v229 = vsel %vm227, %v203, 0
        %231 = vmatprep.subr.bf16.mxu0 0
        %232 = vmatpush1.bf16.msra.mxu0 %v223
        %233 = vmatprep.subr.bf16.mxu0 0
        %234 = vmatpush1.bf16.msra.mxu0 %v224
        %235 = vmatprep.subr.bf16.mxu0 0
        %236 = vmatpush1.bf16.msra.mxu0 0
        %237 = vmatprep.subr.bf16.mxu0 0
        %238 = vmatpush1.bf16.msra.mxu0 0
        %239 = vmatprep.subr.bf16.mxu0 0
        %240 = vmatpush1.bf16.msra.mxu0 0
        %241 = vmatprep.subr.bf16.mxu0 0
        %242 = vmatpush1.bf16.msra.mxu0 0
        %243 = vmatprep.subr.bf16.mxu0 0
        %244 = vmatpush1.bf16.msra.mxu0 0
        %245 = vmatprep.subr.bf16.mxu0 0
        %246 = vmatpush1.bf16.msra.mxu0 0
        %247 = vmatprep.subr.bf16.mxu0 0
        %248 = vmatpush1.bf16.msra.mxu0 0
        %249 = vmatprep.subr.bf16.mxu0 0
        %250 = vmatpush1.bf16.msra.mxu0 0
        %251 = vmatprep.subr.bf16.mxu0 0
        %252 = vmatpush1.bf16.msra.mxu0 0
        %253 = vmatprep.subr.bf16.mxu0 0
        %254 = vmatpush1.bf16.msra.mxu0 0
        %255 = vmatprep.subr.bf16.mxu0 0
        %256 = vmatpush1.bf16.msra.mxu0 0
        %257 = vmatprep.subr.bf16.mxu0 0
        %258 = vmatpush1.bf16.msra.mxu0 0
        %259 = vmatprep.subr.bf16.mxu0 0
        %260 = vmatpush1.bf16.msra.mxu0 0
        %261 = vmatprep.subr.bf16.mxu0 0
        %262 = vmatpush1.bf16.msra.mxu0 0
        %263 = vmatprep.mubr.bf16.mxu0 0
        %264 = vmatmul.mubr.bf16.gmra.mrb[0].mxu0 %v229
        %v265 = vpop.f32.mrb[0].mxu0
        %v266 = vadd.f32 %v213, %v265
        %v267 = vpop.f32.mrb[0].mxu0
        %v268 = vpop.f32.mrb[0].mxu0
        %v269 = vpop.f32.mrb[0].mxu0
        %270 = vdwg.mxu0
        %v271 = vpack.c.bf16 %v266, %v266
        %273 = vrot.lane.b32.xlu0 %v271, 96
        %v274 = vpop.permute.xlu0 %273
        %vm275 = vcmask 64512
        %v277 = vsel %vm275, %v271, 0
        %v280 = vsel %vm275, %v274, 0
        %282 = vmatprep.subr.bf16.mxu0 0
        %283 = vmatpush1.bf16.xpose.msra.mxu0 %v280
        %284 = vmatprep.subr.bf16.mxu0 0
        %285 = vmatpush1.bf16.xpose.msra.mxu0 0
        %286 = vmatprep.subr.bf16.mxu0 0
        %287 = vmatpush1.bf16.xpose.msra.mxu0 0
        %288 = vmatprep.subr.bf16.mxu0 0
        %289 = vmatpush1.bf16.xpose.msra.mxu0 0
        %290 = vmatprep.subr.bf16.mxu0 0
        %291 = vmatpush1.bf16.xpose.msra.mxu0 0
        %292 = vmatprep.subr.bf16.mxu0 0
        %293 = vmatpush1.bf16.xpose.msra.mxu0 0
        %294 = vmatprep.subr.bf16.mxu0 0
        %295 = vmatpush1.bf16.xpose.msra.mxu0 0
        %296 = vmatprep.subr.bf16.mxu0 0
        %297 = vmatpush1.bf16.xpose.msra.mxu0 0
        %298 = vmatprep.subr.bf16.mxu0 0
        %299 = vmatpush1.bf16.xpose.msra.mxu0 0
        %300 = vmatprep.subr.bf16.mxu0 0
        %301 = vmatpush1.bf16.xpose.msra.mxu0 0
        %302 = vmatprep.subr.bf16.mxu0 0
        %303 = vmatpush1.bf16.xpose.msra.mxu0 0
        %304 = vmatprep.subr.bf16.mxu0 0
        %305 = vmatpush1.bf16.xpose.msra.mxu0 0
        %306 = vmatprep.subr.bf16.mxu0 0
        %307 = vmatpush1.bf16.xpose.msra.mxu0 0
        %308 = vmatprep.subr.bf16.mxu0 0
        %309 = vmatpush1.bf16.xpose.msra.mxu0 0
        %310 = vmatprep.subr.bf16.mxu0 0
        %311 = vmatpush1.bf16.xpose.msra.mxu0 0
        %312 = vmatprep.subr.bf16.mxu0 0
        %313 = vmatpush1.bf16.xpose.msra.mxu0 0
        %314 = vmatprep.mubr.bf16.mxu0 0
        %315 = vmatmul.mubr.bf16.gmra.mrb[0].mxu0 %v277
        %v316 = vpop.f32.mrb[0].mxu0
        %v317 = vadd.f32 0.0, %v316
        %v318 = vpop.f32.mrb[0].mxu0
        %v319 = vpop.f32.mrb[0].mxu0
        %v320 = vpop.f32.mrb[0].mxu0
        %321 = vdwg.mxu0
        %v322 = vsel %vm275, %v317, -inf
        %323 = vmax.xlane.f32.xlu0 %v322
        %v324 = vpop.xlane.xlu0 %323
        %v325 = vsub.f32 %v317, %v324
        %v326 = vmul.f32 %v325, 1.442695
        %v327 = vpow.pop %v326
        %v328 = vsel %vm275, %v327, 0.0
        %329 = vadd.xlane.f32.xlu0 %v328
        %v330 = vpop.xlane.xlu0 %329
        %v331 = vrcp.pop %v330
        %v332 = vpack.c.bf16 %v327, %v327
        %333 = vrot.lane.b32.xlu0 %v271, 64
        %v334 = vpop.permute.xlu0 %333
        %v336 = vsel %vm275, %v332, 0
        %vm338 = vcmask 1043456
        %v340 = vsel %vm338, %v334, 0
        %342 = vmatprep.subr.bf16.mxu0 0
        %343 = vmatpush1.bf16.msra.mxu0 %v340
        %344 = vmatprep.subr.bf16.mxu0 0
        %345 = vmatpush1.bf16.msra.mxu0 0
        %346 = vmatprep.subr.bf16.mxu0 0
        %347 = vmatpush1.bf16.msra.mxu0 0
        %348 = vmatprep.subr.bf16.mxu0 0
        %349 = vmatpush1.bf16.msra.mxu0 0
        %350 = vmatprep.subr.bf16.mxu0 0
        %351 = vmatpush1.bf16.msra.mxu0 0
        %352 = vmatprep.subr.bf16.mxu0 0
        %353 = vmatpush1.bf16.msra.mxu0 0
        %354 = vmatprep.subr.bf16.mxu0 0
        %355 = vmatpush1.bf16.msra.mxu0 0
        %356 = vmatprep.subr.bf16.mxu0 0
        %357 = vmatpush1.bf16.msra.mxu0 0
        %358 = vmatprep.subr.bf16.mxu0 0
        %359 = vmatpush1.bf16.msra.mxu0 0
        %360 = vmatprep.subr.bf16.mxu0 0
        %361 = vmatpush1.bf16.msra.mxu0 0
        %362 = vmatprep.subr.bf16.mxu0 0
        %363 = vmatpush1.bf16.msra.mxu0 0
        %364 = vmatprep.subr.bf16.mxu0 0
        %365 = vmatpush1.bf16.msra.mxu0 0
        %366 = vmatprep.subr.bf16.mxu0 0
        %367 = vmatpush1.bf16.msra.mxu0 0
        %368 = vmatprep.subr.bf16.mxu0 0
        %369 = vmatpush1.bf16.msra.mxu0 0
        %370 = vmatprep.subr.bf16.mxu0 0
        %371 = vmatpush1.bf16.msra.mxu0 0
        %372 = vmatprep.subr.bf16.mxu0 0
        %373 = vmatpush1.bf16.msra.mxu0 0
        %374 = vmatprep.mubr.bf16.mxu0 0
        %375 = vmatmul.mubr.bf16.gmra.mrb[0].mxu0 %v336
        %v376 = vpop.f32.mrb[0].mxu0
        %v377 = vadd.f32 0.0, %v376
        %v378 = vpop.f32.mrb[0].mxu0
        %v379 = vpop.f32.mrb[0].mxu0
        %v380 = vpop.f32.mrb[0].mxu0
        %381 = vdwg.mxu0
        %v382 = vmul.f32 %v377, %v331
        %383 = vst.msk [vmem:[#allocation2] sm:$0xff] %vm275, %v382
        %384 = vrot.lane.b32.xlu0 %v271, 120
        %v385 = vpop.permute.xlu0 %384
        %386 = vrot.lane.b32.xlu0 %v271, 88
        %v387 = vpop.permute.xlu0 %386
        %v389 = vsel %vm275, %v385, 0
        %v392 = vsel %vm275, %v387, 0
        %394 = vmatprep.subr.bf16.mxu0 0
        %395 = vmatpush1.bf16.xpose.msra.mxu0 %v392
        %396 = vmatprep.subr.bf16.mxu0 0
        %397 = vmatpush1.bf16.xpose.msra.mxu0 0
        %398 = vmatprep.subr.bf16.mxu0 0
        %399 = vmatpush1.bf16.xpose.msra.mxu0 0
        %400 = vmatprep.subr.bf16.mxu0 0
        %401 = vmatpush1.bf16.xpose.msra.mxu0 0
        %402 = vmatprep.subr.bf16.mxu0 0
        %403 = vmatpush1.bf16.xpose.msra.mxu0 0
        %404 = vmatprep.subr.bf16.mxu0 0
        %405 = vmatpush1.bf16.xpose.msra.mxu0 0
        %406 = vmatprep.subr.bf16.mxu0 0
        %407 = vmatpush1.bf16.xpose.msra.mxu0 0
        %408 = vmatprep.subr.bf16.mxu0 0
        %409 = vmatpush1.bf16.xpose.msra.mxu0 0
        %410 = vmatprep.subr.bf16.mxu0 0
        %411 = vmatpush1.bf16.xpose.msra.mxu0 0
        %412 = vmatprep.subr.bf16.mxu0 0
        %413 = vmatpush1.bf16.xpose.msra.mxu0 0
        %414 = vmatprep.subr.bf16.mxu0 0
        %415 = vmatpush1.bf16.xpose.msra.mxu0 0
        %416 = vmatprep.subr.bf16.mxu0 0
        %417 = vmatpush1.bf16.xpose.msra.mxu0 0
        %418 = vmatprep.subr.bf16.mxu0 0
        %419 = vmatpush1.bf16.xpose.msra.mxu0 0
        %420 = vmatprep.subr.bf16.mxu0 0
        %421 = vmatpush1.bf16.xpose.msra.mxu0 0
        %422 = vmatprep.subr.bf16.mxu0 0
        %423 = vmatpush1.bf16.xpose.msra.mxu0 0
        %424 = vmatprep.subr.bf16.mxu0 0
        %425 = vmatpush1.bf16.xpose.msra.mxu0 0
        %426 = vmatprep.mubr.bf16.mxu0 0
        %427 = vmatmul.mubr.bf16.gmra.mrb[0].mxu0 %v389
        %v428 = vpop.f32.mrb[0].mxu0
        %v429 = vadd.f32 0.0, %v428
        %v430 = vpop.f32.mrb[0].mxu0
        %v431 = vpop.f32.mrb[0].mxu0
        %v432 = vpop.f32.mrb[0].mxu0
        %433 = vdwg.mxu0
        %v434 = vsel %vm275, %v429, -inf
        %435 = vmax.xlane.f32.xlu0 %v434
        %v436 = vpop.xlane.xlu0 %435
        %v437 = vsub.f32 %v429, %v436
        %v438 = vmul.f32 %v437, 1.442695
        %v439 = vpow.pop %v438
        %v440 = vsel %vm275, %v439, 0.0
        %441 = vadd.xlane.f32.xlu0 %v440
        %v442 = vpop.xlane.xlu0 %441
        %v443 = vrcp.pop %v442
        %v444 = vpack.c.bf16 %v439, %v439
        %445 = vrot.lane.b32.xlu0 %v271, 56
        %v446 = vpop.permute.xlu0 %445
        %v448 = vsel %vm275, %v444, 0
        %v451 = vsel %vm338, %v446, 0
        %453 = vmatprep.subr.bf16.mxu0 0
        %454 = vmatpush1.bf16.msra.mxu0 %v451
        %455 = vmatprep.subr.bf16.mxu0 0
        %456 = vmatpush1.bf16.msra.mxu0 0
        %457 = vmatprep.subr.bf16.mxu0 0
        %458 = vmatpush1.bf16.msra.mxu0 0
        %459 = vmatprep.subr.bf16.mxu0 0
        %460 = vmatpush1.bf16.msra.mxu0 0
        %461 = vmatprep.subr.bf16.mxu0 0
        %462 = vmatpush1.bf16.msra.mxu0 0
        %463 = vmatprep.subr.bf16.mxu0 0
        %464 = vmatpush1.bf16.msra.mxu0 0
        %465 = vmatprep.subr.bf16.mxu0 0
        %466 = vmatpush1.bf16.msra.mxu0 0
        %467 = vmatprep.subr.bf16.mxu0 0
        %468 = vmatpush1.bf16.msra.mxu0 0
        %469 = vmatprep.subr.bf16.mxu0 0
        %470 = vmatpush1.bf16.msra.mxu0 0
        %471 = vmatprep.subr.bf16.mxu0 0
        %472 = vmatpush1.bf16.msra.mxu0 0
        %473 = vmatprep.subr.bf16.mxu0 0
        %474 = vmatpush1.bf16.msra.mxu0 0
        %475 = vmatprep.subr.bf16.mxu0 0
        %476 = vmatpush1.bf16.msra.mxu0 0
        %477 = vmatprep.subr.bf16.mxu0 0
        %478 = vmatpush1.bf16.msra.mxu0 0
        %479 = vmatprep.subr.bf16.mxu0 0
        %480 = vmatpush1.bf16.msra.mxu0 0
        %481 = vmatprep.subr.bf16.mxu0 0
        %482 = vmatpush1.bf16.msra.mxu0 0
        %483 = vmatprep.subr.bf16.mxu0 0
        %484 = vmatpush1.bf16.msra.mxu0 0
        %485 = vmatprep.mubr.bf16.mxu0 0
        %486 = vmatmul.mubr.bf16.gmra.mrb[0].mxu0 %v448
        %v487 = vpop.f32.mrb[0].mxu0
        %v488 = vadd.f32 0.0, %v487
        %v489 = vpop.f32.mrb[0].mxu0
        %v490 = vpop.f32.mrb[0].mxu0
        %v491 = vpop.f32.mrb[0].mxu0
        %492 = vdwg.mxu0
        %v493 = vmul.f32 %v488, %v443
        %495 = vrot.lane.b32.xlu0 %v493, 8
        %v496 = vpop.permute.xlu0 %495
        %vm498 = vcmask 130112
        %499 = vst.msk [vmem:[#allocation2] sm:$0xff] %vm498, %v496
        %500 = vrot.lane.b32.xlu0 %v271, 112
        %v501 = vpop.permute.xlu0 %500
        %502 = vrot.lane.b32.xlu0 %v271, 80
        %v503 = vpop.permute.xlu0 %502
        %v505 = vsel %vm275, %v501, 0
        %v508 = vsel %vm275, %v503, 0
        %510 = vmatprep.subr.bf16.mxu0 0
        %511 = vmatpush1.bf16.xpose.msra.mxu0 %v508
        %512 = vmatprep.subr.bf16.mxu0 0
        %513 = vmatpush1.bf16.xpose.msra.mxu0 0
        %514 = vmatprep.subr.bf16.mxu0 0
        %515 = vmatpush1.bf16.xpose.msra.mxu0 0
        %516 = vmatprep.subr.bf16.mxu0 0
        %517 = vmatpush1.bf16.xpose.msra.mxu0 0
        %518 = vmatprep.subr.bf16.mxu0 0
        %519 = vmatpush1.bf16.xpose.msra.mxu0 0
        %520 = vmatprep.subr.bf16.mxu0 0
        %521 = vmatpush1.bf16.xpose.msra.mxu0 0
        %522 = vmatprep.subr.bf16.mxu0 0
        %523 = vmatpush1.bf16.xpose.msra.mxu0 0
        %524 = vmatprep.subr.bf16.mxu0 0
        %525 = vmatpush1.bf16.xpose.msra.mxu0 0
        %526 = vmatprep.subr.bf16.mxu0 0
        %527 = vmatpush1.bf16.xpose.msra.mxu0 0
        %528 = vmatprep.subr.bf16.mxu0 0
        %529 = vmatpush1.bf16.xpose.msra.mxu0 0
        %530 = vmatprep.subr.bf16.mxu0 0
        %531 = vmatpush1.bf16.xpose.msra.mxu0 0
        %532 = vmatprep.subr.bf16.mxu0 0
        %533 = vmatpush1.bf16.xpose.msra.mxu0 0
        %534 = vmatprep.subr.bf16.mxu0 0
        %535 = vmatpush1.bf16.xpose.msra.mxu0 0
        %536 = vmatprep.subr.bf16.mxu0 0
        %537 = vmatpush1.bf16.xpose.msra.mxu0 0
        %538 = vmatprep.subr.bf16.mxu0 0
        %539 = vmatpush1.bf16.xpose.msra.mxu0 0
        %540 = vmatprep.subr.bf16.mxu0 0
        %541 = vmatpush1.bf16.xpose.msra.mxu0 0
        %542 = vmatprep.mubr.bf16.mxu0 0
        %543 = vmatmul.mubr.bf16.gmra.mrb[0].mxu0 %v505
        %v544 = vpop.f32.mrb[0].mxu0
        %v545 = vadd.f32 0.0, %v544
        %v546 = vpop.f32.mrb[0].mxu0
        %v547 = vpop.f32.mrb[0].mxu0
        %v548 = vpop.f32.mrb[0].mxu0
        %549 = vdwg.mxu0
        %v550 = vsel %vm275, %v545, -inf
        %551 = vmax.xlane.f32.xlu0 %v550
        %v552 = vpop.xlane.xlu0 %551
        %v553 = vsub.f32 %v545, %v552
        %v554 = vmul.f32 %v553, 1.442695
        %v555 = vpow.pop %v554
        %v556 = vsel %vm275, %v555, 0.0
        %557 = vadd.xlane.f32.xlu0 %v556
        %v558 = vpop.xlane.xlu0 %557
        %v559 = vrcp.pop %v558
        %v560 = vpack.c.bf16 %v555, %v555
        %561 = vrot.lane.b32.xlu0 %v271, 48
        %v562 = vpop.permute.xlu0 %561
        %v564 = vsel %vm275, %v560, 0
        %v567 = vsel %vm338, %v562, 0
        %569 = vmatprep.subr.bf16.mxu0 0
        %570 = vmatpush1.bf16.msra.mxu0 %v567
        %571 = vmatprep.subr.bf16.mxu0 0
        %572 = vmatpush1.bf16.msra.mxu0 0
        %573 = vmatprep.subr.bf16.mxu0 0
        %574 = vmatpush1.bf16.msra.mxu0 0
        %575 = vmatprep.subr.bf16.mxu0 0
        %576 = vmatpush1.bf16.msra.mxu0 0
        %577 = vmatprep.subr.bf16.mxu0 0
        %578 = vmatpush1.bf16.msra.mxu0 0
        %579 = vmatprep.subr.bf16.mxu0 0
        %580 = vmatpush1.bf16.msra.mxu0 0
        %581 = vmatprep.subr.bf16.mxu0 0
        %582 = vmatpush1.bf16.msra.mxu0 0
        %583 = vmatprep.subr.bf16.mxu0 0
        %584 = vmatpush1.bf16.msra.mxu0 0
        %585 = vmatprep.subr.bf16.mxu0 0
        %586 = vmatpush1.bf16.msra.mxu0 0
        %587 = vmatprep.subr.bf16.mxu0 0
        %588 = vmatpush1.bf16.msra.mxu0 0
        %589 = vmatprep.subr.bf16.mxu0 0
        %590 = vmatpush1.bf16.msra.mxu0 0
        %591 = vmatprep.subr.bf16.mxu0 0
        %592 = vmatpush1.bf16.msra.mxu0 0
        %593 = vmatprep.subr.bf16.mxu0 0
        %594 = vmatpush1.bf16.msra.mxu0 0
        %595 = vmatprep.subr.bf16.mxu0 0
        %596 = vmatpush1.bf16.msra.mxu0 0
        %597 = vmatprep.subr.bf16.mxu0 0
        %598 = vmatpush1.bf16.msra.mxu0 0
        %599 = vmatprep.subr.bf16.mxu0 0
        %600 = vmatpush1.bf16.msra.mxu0 0
        %601 = vmatprep.mubr.bf16.mxu0 0
        %602 = vmatmul.mubr.bf16.gmra.mrb[0].mxu0 %v564
        %v603 = vpop.f32.mrb[0].mxu0
        %v604 = vadd.f32 0.0, %v603
        %v605 = vpop.f32.mrb[0].mxu0
        %v606 = vpop.f32.mrb[0].mxu0
        %v607 = vpop.f32.mrb[0].mxu0
        %608 = vdwg.mxu0
        %v609 = vmul.f32 %v604, %v559
        %611 = vrot.lane.b32.xlu0 %v609, 16
        %v612 = vpop.permute.xlu0 %611
        %vm614 = vcmask 195712
        %615 = vst.msk [vmem:[#allocation2] sm:$0xff] %vm614, %v612
        %616 = vrot.lane.b32.xlu0 %v271, 104
        %v617 = vpop.permute.xlu0 %616
        %618 = vrot.lane.b32.xlu0 %v271, 72
        %v619 = vpop.permute.xlu0 %618
        %v621 = vsel %vm275, %v617, 0
        %v624 = vsel %vm275, %v619, 0
        %626 = vmatprep.subr.bf16.mxu0 0
        %627 = vmatpush1.bf16.xpose.msra.mxu0 %v624
        %628 = vmatprep.subr.bf16.mxu0 0
        %629 = vmatpush1.bf16.xpose.msra.mxu0 0
        %630 = vmatprep.subr.bf16.mxu0 0
        %631 = vmatpush1.bf16.xpose.msra.mxu0 0
        %632 = vmatprep.subr.bf16.mxu0 0
        %633 = vmatpush1.bf16.xpose.msra.mxu0 0
        %634 = vmatprep.subr.bf16.mxu0 0
        %635 = vmatpush1.bf16.xpose.msra.mxu0 0
        %636 = vmatprep.subr.bf16.mxu0 0
        %637 = vmatpush1.bf16.xpose.msra.mxu0 0
        %638 = vmatprep.subr.bf16.mxu0 0
        %639 = vmatpush1.bf16.xpose.msra.mxu0 0
        %640 = vmatprep.subr.bf16.mxu0 0
        %641 = vmatpush1.bf16.xpose.msra.mxu0 0
        %642 = vmatprep.subr.bf16.mxu0 0
        %643 = vmatpush1.bf16.xpose.msra.mxu0 0
        %644 = vmatprep.subr.bf16.mxu0 0
        %645 = vmatpush1.bf16.xpose.msra.mxu0 0
        %646 = vmatprep.subr.bf16.mxu0 0
        %647 = vmatpush1.bf16.xpose.msra.mxu0 0
        %648 = vmatprep.subr.bf16.mxu0 0
        %649 = vmatpush1.bf16.xpose.msra.mxu0 0
        %650 = vmatprep.subr.bf16.mxu0 0
        %651 = vmatpush1.bf16.xpose.msra.mxu0 0
        %652 = vmatprep.subr.bf16.mxu0 0
        %653 = vmatpush1.bf16.xpose.msra.mxu0 0
        %654 = vmatprep.subr.bf16.mxu0 0
        %655 = vmatpush1.bf16.xpose.msra.mxu0 0
        %656 = vmatprep.subr.bf16.mxu0 0
        %657 = vmatpush1.bf16.xpose.msra.mxu0 0
        %658 = vmatprep.mubr.bf16.mxu0 0
        %659 = vmatmul.mubr.bf16.gmra.mrb[0].mxu0 %v621
        %v660 = vpop.f32.mrb[0].mxu0
        %v661 = vadd.f32 0.0, %v660
        %v662 = vpop.f32.mrb[0].mxu0
        %v663 = vpop.f32.mrb[0].mxu0
        %v664 = vpop.f32.mrb[0].mxu0
        %665 = vdwg.mxu0
        %v666 = vsel %vm275, %v661, -inf
        %667 = vmax.xlane.f32.xlu0 %v666
        %v668 = vpop.xlane.xlu0 %667
        %v669 = vsub.f32 %v661, %v668
        %v670 = vmul.f32 %v669, 1.442695
        %v671 = vpow.pop %v670
        %v672 = vsel %vm275, %v671, 0.0
        %673 = vadd.xlane.f32.xlu0 %v672
        %v674 = vpop.xlane.xlu0 %673
        %v675 = vrcp.pop %v674
        %v676 = vpack.c.bf16 %v671, %v671
        %677 = vrot.lane.b32.xlu0 %v271, 40
        %v678 = vpop.permute.xlu0 %677
        %v680 = vsel %vm275, %v676, 0
        %v683 = vsel %vm338, %v678, 0
        %685 = vmatprep.subr.bf16.mxu0 0
        %686 = vmatpush1.bf16.msra.mxu0 %v683
        %687 = vmatprep.subr.bf16.mxu0 0
        %688 = vmatpush1.bf16.msra.mxu0 0
        %689 = vmatprep.subr.bf16.mxu0 0
        %690 = vmatpush1.bf16.msra.mxu0 0
        %691 = vmatprep.subr.bf16.mxu0 0
        %692 = vmatpush1.bf16.msra.mxu0 0
        %693 = vmatprep.subr.bf16.mxu0 0
        %694 = vmatpush1.bf16.msra.mxu0 0
        %695 = vmatprep.subr.bf16.mxu0 0
        %696 = vmatpush1.bf16.msra.mxu0 0
        %697 = vmatprep.subr.bf16.mxu0 0
        %698 = vmatpush1.bf16.msra.mxu0 0
        %699 = vmatprep.subr.bf16.mxu0 0
        %700 = vmatpush1.bf16.msra.mxu0 0
        %701 = vmatprep.subr.bf16.mxu0 0
        %702 = vmatpush1.bf16.msra.mxu0 0
        %703 = vmatprep.subr.bf16.mxu0 0
        %704 = vmatpush1.bf16.msra.mxu0 0
        %705 = vmatprep.subr.bf16.mxu0 0
        %706 = vmatpush1.bf16.msra.mxu0 0
        %707 = vmatprep.subr.bf16.mxu0 0
        %708 = vmatpush1.bf16.msra.mxu0 0
        %709 = vmatprep.subr.bf16.mxu0 0
        %710 = vmatpush1.bf16.msra.mxu0 0
        %711 = vmatprep.subr.bf16.mxu0 0
        %712 = vmatpush1.bf16.msra.mxu0 0
        %713 = vmatprep.subr.bf16.mxu0 0
        %714 = vmatpush1.bf16.msra.mxu0 0
        %715 = vmatprep.subr.bf16.mxu0 0
        %716 = vmatpush1.bf16.msra.mxu0 0
        %717 = vmatprep.mubr.bf16.mxu0 0
        %718 = vmatmul.mubr.bf16.gmra.mrb[0].mxu0 %v680
        %v719 = vpop.f32.mrb[0].mxu0
        %v720 = vadd.f32 0.0, %v719
        %v721 = vpop.f32.mrb[0].mxu0
        %v722 = vpop.f32.mrb[0].mxu0
        %v723 = vpop.f32.mrb[0].mxu0
        %724 = vdwg.mxu0
        %v725 = vmul.f32 %v720, %v675
        %727 = vrot.lane.b32.xlu0 %v725, 24
        %v728 = vpop.permute.xlu0 %727
        %vm730 = vcmask 261312
        %731 = vst.msk [vmem:[#allocation2] sm:$0xff] %vm730, %v728
        %v732 = vld [vmem:[#allocation2] sm:$0xff]
        %733 = vst.msk [vmem:[%s200] sm:$0xff] %vm227, %v732
        %s734 = sand.u32 %s97, 1
        %s735 = scalar_lea.sflag [#allocation5], %s734
        %s736 = sand.u32 %s97, 1
        %s737 = smul.addr %s736, 8
        %s738 = scalar_lea.vmem [#allocation8], %s737
        // Predicated region
        $region41: #{tpu_custom_call.1} parent=31 // pred_check
          %p739 = pneg %p107
        $region42: #{tpu_custom_call.1} parent=31 // pred_check_branch
          %741 = sbr.rel (%p739) target = $region44
        $region43: #{tpu_custom_call.1} parent=31 // pred_region
          %s743 = ssub.s32 128, 128
          %744 = vsyncadd %s735, %s743
          %s745 = smul.addr %s21, 128
          %s746 = scalar_lea.hbm %s3, %s745
          %s748 = sshll.u32 %s738, 4
          %s749 = int_to_ptr.vmem [resolvable:$true] %s748
          %751 = dma.vmem_to_hbm [thread:$0]  %s749, 128, %s746, %s735
        $region44: #{tpu_custom_call.1} parent=31 // pred_fallthru
          _
      $region32: #{tpu_custom_call.1} parent=5 // pred_fallthru
        _
      %p752 = scmp.le.s32.totalorder 2, %s16
      // Predicated region
      $region45: #{tpu_custom_call.1} parent=5 // pred_check
        %p753 = pneg %p752
      $region46: #{tpu_custom_call.1} parent=5 // pred_check_branch
        %755 = sbr.rel (%p753) target = $region48
      $region47: #{tpu_custom_call.1} parent=5 // pred_region
        %s756 = ssub.s32 %s16, 2
        // Predicated region
        $region49: #{tpu_custom_call.1} parent=47 // pred_check
          %p757 = pneg %p113
        $region50: #{tpu_custom_call.1} parent=47 // pred_check_branch
          %759 = sbr.rel (%p757) target = $region52
        $region51: #{tpu_custom_call.1} parent=47 // pred_region
          %s760 = sand.u32 %s98, 1
          %s761 = scalar_lea.sflag [#allocation5], %s760
          %s762 = sand.u32 %s98, 1
          %s763 = smul.addr %s762, 8
          %s764 = scalar_lea.vmem [#allocation8], %s763
          %765 = dma.done %s761, 128
        $region52: #{tpu_custom_call.1} parent=47 // pred_fallthru
          _
      $region48: #{tpu_custom_call.1} parent=5 // pred_fallthru
        _
    $region6: #{tpu_custom_call.1} parent=1 // loop_footer
      %s20 = sadd.s32 1, %s16
    $region7: #{tpu_custom_call.1} parent=1 // loop_footer_branch
      %15 = sbr.rel target = $region3
    $region8: #{tpu_custom_call.1} parent=1 // loop_exit
      _
    %766 = vsyncpa [#allocation4], 1
    %s767 = scalar_lea.sflag [#allocation4], 1
    %768 = vsyncpa %s767, 1
    %769 = vsyncpa [#allocation7], 1
    %770 = vsyncpa [#allocation5], 1
    %s771 = scalar_lea.sflag [#allocation5], 1
    %772 = vsyncpa %s771, 1

</llo_original>
